<compile_context>
chip_gen: v6e
topology: v6e:2x2x1
jax: 0.10.0
libtpu: 0.0.40
codegen_flags: <defaults>
</compile_context>

<pallas_src>
import functools

import numpy as np
import jax
import jax.numpy as jnp
from jax.experimental import pallas as pl
from jax.experimental.pallas import tpu as pltpu

EPS = 1e-5          # nn.BatchNorm2d default eps
CPAD = 64           # per-tap channel slot (multiple of 16 -> aligned bf16 stores)

# (circular-pad sequence, dilation) per DiagConv layer, as in the torch forward.
LAYER_CFGS = [((1,), 1), ((3,), 3), ((9,), 9), ((27,), 27), ((39, 42), 81)]

_CPARAMS = pltpu.CompilerParams(
    dimension_semantics=("arbitrary",),
    vmem_limit_bytes=48 * 1024 * 1024,   # stays under v7x's 64 MiB physical VMEM
)


def _full_spec(shape):
    n = len(shape)
    return pl.BlockSpec(tuple(shape), lambda i, n=n: (0,) * n)


# ----------------------- circular-pad tap bookkeeping ----------------------- #

def _axis_src_index(n, pads, dilation, tap):
    """Source index into the ORIGINAL axis for output position i and kernel tap.

    Exactly reproduces the composition of sequential torch circular pads
    (including the pad(39)+pad(42) chain before the dilation-81 conv).
    """
    sizes = [n]
    for p in pads:
        sizes.append(sizes[-1] + 2 * p)
    idx = np.arange(n) + tap * dilation          # position in fully padded axis
    for p, m in zip(reversed(pads), reversed(sizes[:-1])):
        idx = (idx - p) % m
    return idx


def _runs(delta):
    """Decompose a per-position shift array into (start, end, shift) runs."""
    segs, start = [], 0
    n = len(delta)
    for i in range(1, n + 1):
        if i == n or delta[i] != delta[start]:
            segs.append((int(start), int(i), int(delta[start])))
            start = i
    return segs


def _row_segments(n, pads, dilation, tap):
    # shift taken mod n: the H-wrap is absorbed for free by the mod-P lane roll.
    idx = _axis_src_index(n, pads, dilation, tap)
    return _runs((idx - np.arange(n)) % n)


def _col_runs(n, pads, dilation, tap):
    # exact signed shift: within a run there is NO wrap, so one roll suffices.
    idx = _axis_src_index(n, pads, dilation, tap)
    return _runs(idx - np.arange(n))


# --------------------------- roll-direction probe --------------------------- #

def _probe_kernel(x_ref, o_ref):
    o_ref[...] = pltpu.roll(x_ref[...], 1, axis=1)


def _detect_roll_sign():
    """Return s such that pltpu.roll(x, (s*o) % P, axis=-1)[..., p] == x[..., (p+o) % P]."""
    x = jnp.arange(8 * 128, dtype=jnp.float32).reshape(8, 128)
    out = pl.pallas_call(
        _probe_kernel,
        out_shape=jax.ShapeDtypeStruct((8, 128), jnp.float32),
        grid=(1,),
        in_specs=[_full_spec((8, 128))],
        out_specs=_full_spec((8, 128)),
    )(x)
    out = np.asarray(jax.device_get(out))
    xn = np.asarray(jax.device_get(x))
    if np.array_equal(out, np.roll(xn, 1, axis=1)):    # out[i] = x[i - 1]
        return -1
    if np.array_equal(out, np.roll(xn, -1, axis=1)):   # out[i] = x[i + 1]
        return 1
    raise RuntimeError("unexpected pltpu.roll semantics")


# ------------------------------ fused kernel -------------------------------- #

def _make_fused_kernel(B, H, Wd, roll_sign):
    P = H * Wd
    BP = B * P
    n_layers = len(LAYER_CFGS)

    # Static per-layer shift plans (Python time).
    row_plans = [[_row_segments(H, pads, d, kh) for kh in range(3)]
                 for (pads, d) in LAYER_CFGS]
    col_plans = [[_col_runs(Wd, pads, d, kw) for kw in range(3)]
                 for (pads, d) in LAYER_CFGS]

    # Unique static mask thresholds (hoisted: each mask is built once in-kernel).
    row_thr = sorted({s[1] for plan in row_plans for segs in plan for s in segs[:-1]})
    col_thr = sorted({r[1] for plan in col_plans for runs in plan for r in runs[:-1]})

    def roll_src(x, off):
        # out[:, p] = x[:, (p + off) % P]
        off = off % P
        if off == 0:
            return x
        return pltpu.roll(x, (roll_sign * off) % P, axis=1)

    def kernel(*refs):
        x_ref = refs[0]
        layer_refs = [refs[1 + 3 * li: 4 + 3 * li] for li in range(n_layers)]
        w1_ref = refs[1 + 3 * n_layers]
        b1_ref = refs[2 + 3 * n_layers]
        out_ref = refs[3 + 3 * n_layers]
        xstk_ref = refs[4 + 3 * n_layers]          # (9*CPAD, B*P) bf16 scratch

        # ---- hoisted static masks (computed once, reused everywhere) ----
        lane = jax.lax.broadcasted_iota(jnp.int32, (1, P), 1)
        rowv = lane // Wd
        colv = lane - rowv * Wd
        row_lt = {t: rowv < t for t in row_thr}
        col_lt = {t: colv < t for t in col_thr}

        # Zero the stacked-tap scratch once: the pad channel slots (their weight
        # columns are zero) and the layer-1 unused rows must hold finite values.
        xstk_ref[...] = jnp.zeros(xstk_ref.shape, xstk_ref.dtype)

        def select(vals, bounds, masks):
            v = vals[-1]
            for i in range(len(vals) - 2, -1, -1):
                v = jnp.where(masks[bounds[i]], vals[i], v)
            return v

        act = None                                 # (50, B*P) activations between layers
        for li in range(n_layers):
            w_ref, g_ref, bt_ref = layer_refs[li]
            cin = 2 if li == 0 else 50

            # ---- build the (9*CPAD, B*P) stacked-tap bf16 input in VMEM ----
            for b in range(B):
                if li == 0:
                    xb = x_ref[b].astype(jnp.bfloat16)        # (2, P)
                else:
                    xb = act[:, b * P:(b + 1) * P]            # (50, P) bf16
                # 3 row-shifted copies: one mod-P roll per row segment.
                xh = []
                for kh in range(3):
                    segs = row_plans[li][kh]
                    vals = [roll_src(xb, sh * Wd) for (_, _, sh) in segs]
                    xh.append(select(vals, [s[1] for s in segs], row_lt))
                # 9 taps = signed-run column shifts of the row-shifted copies.
                for kh in range(3):
                    for kw in range(3):
                        runs = col_plans[li][kw]
                        vals = [roll_src(xh[kh], sw) for (_, _, sw) in runs]
                        piece = select(vals, [r[1] for r in runs], col_lt)
                        k = kh * 3 + kw
                        xstk_ref[k * CPAD:k * CPAD + cin, b * P:(b + 1) * P] = piece

            # ---- ONE MXU matmul per layer: (50, 576) @ (576, B*P) -> f32 ----
            y = jnp.dot(w_ref[...], xstk_ref[...],
                        preferred_element_type=jnp.float32)

            # ---- BatchNorm2d (training-mode batch stats over B*H*W) + ReLU ----
            # One-pass stats; mean folded into the affine; conv bias omitted
            # (it cancels exactly under batch-stat normalization).
            inv_n = 1.0 / float(BP)
            s = jnp.sum(y, axis=1, keepdims=True)
            ss = jnp.sum(y * y, axis=1, keepdims=True)
            mean = s * inv_n
            var = ss * inv_n - mean * mean
            scale = g_ref[...] * jax.lax.rsqrt(var + EPS)
            shift = bt_ref[...] - mean * scale
            z = jnp.maximum(y * scale + shift, 0.0)
            act = z.astype(jnp.bfloat16) if li + 1 < n_layers else z

        # ---- final 1x1 conv (50 -> 1): VPU multiply + sublane reduce, tanh ----
        o = jnp.sum(act * w1_ref[...], axis=0, keepdims=True) + b1_ref[...]
        out_ref[...] = jnp.tanh(o)                 # lane-dense (1, B*P)

    return kernel


def baseline_double_forward(x_nchw, params, roll_sign):
    """x_nchw: (B, 2, H, W) -> (B, H*W), matching torch.flatten(start_dim=1) + tanh."""
    B, C0, H, Wd = x_nchw.shape
    P = H * Wd
    BP = B * P
    assert P % 128 == 0, "H*W must be lane-aligned (multiple of 128)"
    x0 = x_nchw.reshape(B, C0, P).astype(jnp.float32)
    args = [x0]
    for i in range(5):
        p = params[f"layer{i + 1}"]
        args += [p["w_stk"], p["gamma"], p["beta"]]
    args += [params["conv1_w"], params["conv1_b"]]
    out = pl.pallas_call(
        _make_fused_kernel(B, H, Wd, roll_sign),
        out_shape=jax.ShapeDtypeStruct((1, BP), jnp.float32),
        grid=(1,),
        in_specs=[_full_spec(a.shape) for a in args],
        out_specs=_full_spec((1, BP)),
        scratch_shapes=[pltpu.VMEM((9 * CPAD, BP), jnp.bfloat16)],
        compiler_params=_CPARAMS,
    )(*args)
    return out.reshape(B, P)


# -------------------------- pure-JAX reference ------------------------------ #

def reference_forward(x_nchw, params):
    """Gather-based reference using the same bf16 packed weights / f32-BN recipe."""
    B, C0, H, Wd = x_nchw.shape
    P = H * Wd
    x = x_nchw.reshape(B, C0, P).astype(jnp.float32)
    for li, (pads, d) in enumerate(LAYER_CFGS):
        p = params[f"layer{li + 1}"]
        ci = x.shape[1]
        co = p["w_stk"].shape[0]
        y = jnp.zeros((B, co, P), jnp.float32) + p["b"][None]
        for k in range(9):
            kh, kw = divmod(k, 3)
            ih = _axis_src_index(H, pads, d, kh)
            iw = _axis_src_index(Wd, pads, d, kw)
            q = (ih[:, None] * Wd + iw[None, :]).reshape(-1)
            xs = x[:, :, q].astype(jnp.bfloat16)
            wk = p["w_stk"][:, k * CPAD:k * CPAD + ci]        # (co, ci) bf16
            y = y + jnp.einsum("oc,bcp->bop", wk, xs,
                               preferred_element_type=jnp.float32)
        mean = jnp.mean(y, axis=(0, 2), keepdims=True)
        var = jnp.mean(jnp.square(y - mean), axis=(0, 2), keepdims=True)
        y = (y - mean) * jax.lax.rsqrt(var + EPS) * p["gamma"][None] + p["beta"][None]
        x = jnp.maximum(y, 0.0)
    z = jnp.sum(x * params["conv1_w"][None], axis=1) + params["conv1_b"]
    return jnp.tanh(z)


# ------------------------------- parameters --------------------------------- #

def init_params(key):
    cfgs = [(2, 50), (50, 50), (50, 50), (50, 50), (50, 50)]
    params = {}
    for i, (ci, co) in enumerate(cfgs):
        key, kw_, kb, kg, kbt = jax.random.split(key, 5)
        fan_in = ci * 9
        w = jax.random.normal(kw_, (co, ci, 3, 3), jnp.float32) / jnp.sqrt(fan_in)
        # TODO(synk): DiagConv2d class definition is not provided in the reference;
        # modeled as a dilated Conv2d whose 3x3 kernel is symmetrized across the
        # kernel diagonal (diag_ratio=1). The conv compute itself is exact.
        w = 0.5 * (w + jnp.swapaxes(w, -1, -2))
        # Pre-stack weights for the single K-stacked matmul:
        # column (kh*3+kw)*CPAD + c  <->  w[:, c, kh, kw]; pad slots are zero.
        wt = jnp.transpose(w, (0, 2, 3, 1)).reshape(co, 9, ci)
        w_stk = jnp.pad(wt, ((0, 0), (0, 0), (0, CPAD - ci))).reshape(co, 9 * CPAD)
        params[f"layer{i + 1}"] = dict(
            w_stk=w_stk.astype(jnp.bfloat16),
            b=0.01 * jax.random.normal(kb, (co, 1), jnp.float32),
            gamma=1.0 + 0.1 * jax.random.normal(kg, (co, 1), jnp.float32),
            beta=0.1 * jax.random.normal(kbt, (co, 1), jnp.float32),
        )
    key, k1, k2 = jax.random.split(key, 3)
    params["conv1_w"] = jax.random.normal(k1, (50, 1), jnp.float32) / jnp.sqrt(50.0)
    params["conv1_b"] = 0.01 * jax.random.normal(k2, (1, 1), jnp.float32)
    return params


# --------------------------------- main -------------------------------------- #

if __name__ == "__main__":
    key = jax.random.PRNGKey(0)
    kp, kx = jax.random.split(key)
    params = init_params(kp)

    # Small but valid shapes: the circular pad of 42 in the torch model needs
    # H, W >= 42; H = W = 48 also keeps the flattened H*W lane axis 128-aligned.
    B, C, H, W = 2, 2, 48, 48
    x = jax.random.normal(kx, (B, C, H, W), dtype=jnp.float32)

    roll_sign = _detect_roll_sign()

    fwd = jax.jit(functools.partial(baseline_double_forward,
                                    params=params, roll_sign=roll_sign))
    out = fwd(x)
    jax.block_until_ready(out)
    assert out.shape == (B, H * W), out.shape
    assert bool(jnp.all(jnp.isfinite(out)))

    # Cross-check the in-kernel shift/stack/matmul/BN plumbing against an
    # independent gather-based pure-JAX reference (same bf16 packed weights).
    ref = jax.jit(functools.partial(reference_forward, params=params))(x)
    err = float(jnp.max(jnp.abs(out - ref)))
    assert err < 2e-2, f"mismatch vs reference: max abs err = {err}"

    print("KERNEL_OK")
</pallas_src>

<mosaic_0001>
module attributes {stable_mosaic.version = 11 : i64} {
  func.func @_probe_kernel(%arg0: i32, %arg1: memref<8x128xf32, #tpu.memory_space<vmem>>, %arg2: memref<8x128xf32, #tpu.memory_space<vmem>>) attributes {dimension_semantics = [#tpu.dimension_semantics<arbitrary>], iteration_bounds = array<i64: 1>, scalar_prefetch = 0 : i64, scratch_operands = 0 : i64, tpu.core_type = #tpu.core_type<tc>, window_params = [{pipeline_mode = #tpu.pipeline_mode<synchronous>, transform_indices = @transform_0, window_bounds = array<i64: 8, 128>}, {pipeline_mode = #tpu.pipeline_mode<synchronous>, transform_indices = @transform_1, window_bounds = array<i64: 8, 128>}]} {
    %c0 = arith.constant 0 : index
    %c0_0 = arith.constant 0 : index
    %0 = vector.load %arg1[%c0, %c0_0] : memref<8x128xf32, #tpu.memory_space<vmem>>, vector<8x128xf32>
    %c1_i32 = arith.constant 1 : i32
    %1 = tpu.dynamic_rotate %0 by %c1_i32 dim 1 : vector<8x128xf32>, i32 -> vector<8x128xf32>
    %c0_1 = arith.constant 0 : index
    %c0_2 = arith.constant 0 : index
    %2 = vector.load %arg2[%c0_1, %c0_2] : memref<8x128xf32, #tpu.memory_space<vmem>>, vector<8x128xf32>
    tpu.vector_store %arg2[%c0_1, %c0_2], %1 {strides = array<i32>} : memref<8x128xf32, #tpu.memory_space<vmem>>, vector<8x128xf32>,
    return
  }
  func.func @transform_0(%arg0: i32) -> (i32, i32) {
    %c0_i32 = arith.constant 0 : i32
    %c0_i32_0 = arith.constant 0 : i32
    %c0_i32_1 = arith.constant 0 : i32
    return %c0_i32, %c0_i32_0 : i32, i32
  }
  func.func @transform_1(%arg0: i32) -> (i32, i32) {
    %c0_i32 = arith.constant 0 : i32
    %c0_i32_0 = arith.constant 0 : i32
    %c0_i32_1 = arith.constant 0 : i32
    return %c0_i32, %c0_i32_0 : i32, i32
  }
}

</mosaic_0001>

<llo_original>
// kernel: tpu_custom_call.1
$region0: #{tpu_custom_call.1}
  #allocation0 [shape = 'u32[]', space=smem, size = 0x4, offset = 0x4, fixed_abs, tag = 'smem constant byte address 0x4 - core index']
  #allocation1 [shape = 'u32[144,128]{1,0:T(1,128)}', space=vmem, size = 0x12000, scoped, tag = 'internal scratch']
  %s0 = inlined_call_operand.hbm [shape: f32[8,128], index: 0, kind: input, shape index: {}]
  %s1 = inlined_call_operand.hbm [shape: f32[8,128], index: 1, kind: output, shape index: {}]
  %s2 = sld [smem:[#allocation0]]
  $region18: #{tpu_custom_call.1} parent=0
    _
  %s4 = ssub.s32 1, %s2
  %s5 = scalar_select 0, %s4, %s2
  $region1: #{tpu_custom_call.1} parent=0
    #allocation2 [shape = 'u8[4096]{0}', space=vmem, size = 0x1000, scoped, tag = 'input window, operand 0, single buffered']
    #allocation3 [shape = 's32[1]{0}', space=sflag, size = 0x4, scoped, tag = 'scoped memory for tpu_custom_call.1']
    #allocation4 [shape = 's32[1]{0}', space=sflag, size = 0x4, scoped, tag = 'scoped memory for tpu_custom_call.1']
    #allocation5 [shape = 'u8[4096]{0}', space=vmem, size = 0x1000, scoped, tag = 'output window, operand 0, single buffered']
    %6 = vsyncpa [#allocation3], 0
    %7 = vsyncpa [#allocation4], 0
    // Predicated region
    $region2: #{tpu_custom_call.1} parent=1 // pred_check
      _
    $region3: #{tpu_custom_call.1} parent=1 // pred_check_branch
      %9 = sbr.rel (0) target = $region5
    $region4: #{tpu_custom_call.1} parent=1 // pred_region
      %s11 = ssub.s32 128, 128
      %12 = vsyncadd [#allocation3], %s11
      %s14 = sshll.u32 [#allocation2], 4
      %s15 = int_to_ptr.vmem [resolvable:$true] %s14
      %17 = dma.hbm_to_vmem [thread:$0]  %s0, 128, %s15, [#allocation3]
    $region5: #{tpu_custom_call.1} parent=1 // pred_fallthru
      _
    // Predicated region
    $region6: #{tpu_custom_call.1} parent=1 // pred_check
      _
    $region7: #{tpu_custom_call.1} parent=1 // pred_check_branch
      %19 = sbr.rel (0) target = $region9
    $region8: #{tpu_custom_call.1} parent=1 // pred_region
      %20 = dma.done [#allocation3], 128
    $region9: #{tpu_custom_call.1} parent=1 // pred_fallthru
      _
    %v21 = vld [vmem:[#allocation2] sm:$0xff]
    %22 = vrot.lane.b32.xlu0 %v21, 1
    %v23 = vpop.permute.xlu0 %22
    %24 = vst [vmem:[#allocation5] sm:$0xff] %v23
    // Predicated region
    $region10: #{tpu_custom_call.1} parent=1 // pred_check
      _
    $region11: #{tpu_custom_call.1} parent=1 // pred_check_branch
      %26 = sbr.rel (0) target = $region13
    $region12: #{tpu_custom_call.1} parent=1 // pred_region
      %s28 = ssub.s32 128, 128
      %29 = vsyncadd [#allocation4], %s28
      %s31 = sshll.u32 [#allocation5], 4
      %s32 = int_to_ptr.vmem [resolvable:$true] %s31
      %34 = dma.vmem_to_hbm [thread:$0]  %s32, 128, %s1, [#allocation4]
    $region13: #{tpu_custom_call.1} parent=1 // pred_fallthru
      _
    // Predicated region
    $region14: #{tpu_custom_call.1} parent=1 // pred_check
      _
    $region15: #{tpu_custom_call.1} parent=1 // pred_check_branch
      %36 = sbr.rel (0) target = $region17
    $region16: #{tpu_custom_call.1} parent=1 // pred_region
      %37 = dma.done [#allocation4], 128
    $region17: #{tpu_custom_call.1} parent=1 // pred_fallthru
      _
    %38 = vsyncpa [#allocation3], 1
    %39 = vsyncpa [#allocation4], 1

</llo_original>
